<compile_context>
chip_gen: v5e
topology: v5e:2x2
jax: 0.10.0
libtpu: 0.0.40
codegen_flags: <defaults>
</compile_context>

<pallas_src>
import functools
import math

import jax
import jax.numpy as jnp
from jax.experimental import pallas as pl
from jax.experimental.pallas import tpu as pltpu

LANE = 128


def _round_up(x, m):
    return (x + m - 1) // m * m


def _pad_to(arr, shape):
    pads = [(0, s - d) for d, s in zip(arr.shape, shape)]
    return jnp.pad(arr, pads)


# -----------------------------------------------------------------------------
# Fused tower kernel (one grid axis over row tiles of the flattened token slab):
#   h   = x_tile @ W                      (bf16 MXU, f32 acc)
#   ln  = LayerNorm(h)                    (f32 stats, gamma/beta padded with 0)
#   acc += mask_tile @ ln.bf16            (masked bbox-sum pooling, bf16 MXU)
#   last tile: out = L2norm(acc [@ Wproj])
# -----------------------------------------------------------------------------
def _tower_kernel(*refs, use_proj, inv_d, n_pad, eps):
    if use_proj:
        x_ref, w_ref, g_ref, b_ref, m_ref, wp_ref, o_ref, acc_ref = refs
    else:
        x_ref, w_ref, g_ref, b_ref, m_ref, o_ref, acc_ref = refs
        wp_ref = None

    i = pl.program_id(0)

    @pl.when(i == 0)
    def _():
        acc_ref[...] = jnp.zeros_like(acc_ref)

    # dense encoder stand-in: bf16 MXU matmul with f32 accumulation.
    h = jnp.dot(x_ref[...], w_ref[...], preferred_element_type=jnp.float32)

    # LayerNorm over the d_valid real columns.  Padded lanes of h are exactly 0
    # (weight columns there are 0), so full-lane sums equal valid-lane sums;
    # the centered sum-of-squares gets an exact n_pad*mean^2 correction for the
    # zero-padded lanes.  eps = 1e-5 (PyTorch nn.LayerNorm default).
    mean = jnp.sum(h, axis=-1, keepdims=True) * inv_d
    c = h - mean
    var = (jnp.sum(c * c, axis=-1, keepdims=True) - n_pad * (mean * mean)) * inv_d
    ln = c * jax.lax.rsqrt(var + eps) * g_ref[...] + b_ref[...]
    # gamma/beta padded lanes are 0 -> padded lanes of ln are exactly 0.

    # masked-sum bbox pooling: scattered (Np, TM) mask @ (TM, Dp) tokens, bf16
    # MXU operands, f32 accumulator resident in VMEM across row tiles.
    acc_ref[...] += jnp.dot(m_ref[...], ln.astype(jnp.bfloat16),
                            preferred_element_type=jnp.float32)

    @pl.when(i == pl.num_programs(0) - 1)
    def _():
        pooled = acc_ref[...]
        # The masked-mean divide is dropped: the (bias-free) linear projection
        # is scale-equivariant and the L2 norm cancels any per-row scalar.
        if use_proj:
            proj = jnp.dot(pooled.astype(jnp.bfloat16), wp_ref[...],
                           preferred_element_type=jnp.float32)
        else:
            proj = pooled
        # F.normalize(dim=-1); padded lanes are exactly 0 -> correct norm.
        ssq = jnp.sum(proj * proj, axis=-1, keepdims=True)
        o_ref[...] = (proj * jax.lax.rsqrt(jnp.maximum(ssq, 1e-24))).astype(o_ref.dtype)


def tower_forward(x2d, w, gamma, beta, mask, w_proj, *, d_valid, out_valid,
                  tm_max=2048, eps=1e-5):
    """Fused encoder + bbox pooling + (proj) + L2 norm.

    x2d:   (M, Kp)  bf16 flattened token inputs (M = batch * seq_len)
    w:     (Kp, Dp) bf16 encoder weight, zero-padded
    gamma: (1, Dp)  f32, beta: (1, Dp) f32 (zero in padded lanes)
    mask:  (N, M)   f32 scattered bbox mask (row n weights tokens of its image)
    w_proj:(Dp, Ep) bf16 or None
    Returns (N, out_valid) f32 normalized features.
    """
    M, Kp = x2d.shape
    Dp = w.shape[1]
    N = mask.shape[0]
    use_proj = w_proj is not None
    Ep = w_proj.shape[1] if use_proj else Dp

    # Large row tiles (<= 2048) amortize per-step overhead; pipelined footprint
    # (x tile bf16 + mask tile bf16, double-buffered, + resident weights) stays
    # well inside every generation's scoped VMEM default.
    TM = min(tm_max, _round_up(M, 8))
    Mp = _round_up(M, TM)
    Np = _round_up(max(N, 1), 8)

    if Mp != M:  # only when M is not already a multiple of 8 / TM (rare, small)
        x2d = jnp.pad(x2d, ((0, Mp - M), (0, 0)))
    # Scattered mask, bf16 (0/1 entries exact).  Padded rows/columns are 0 so
    # padded tokens / bbox rows contribute nothing to the pooled accumulator.
    mask_p = _pad_to(mask, (Np, Mp)).astype(jnp.bfloat16)

    in_specs = [
        pl.BlockSpec((TM, Kp), lambda i: (i, 0)),   # token tile (pipelined)
        pl.BlockSpec((Kp, Dp), lambda i: (0, 0)),   # encoder weight (resident)
        pl.BlockSpec((1, Dp), lambda i: (0, 0)),    # gamma (resident)
        pl.BlockSpec((1, Dp), lambda i: (0, 0)),    # beta  (resident)
        pl.BlockSpec((Np, TM), lambda i: (0, i)),   # mask tile (pipelined)
    ]
    operands = [x2d, w, gamma, beta, mask_p]
    if use_proj:
        in_specs.append(pl.BlockSpec((Dp, Ep), lambda i: (0, 0)))  # proj (resident)
        operands.append(w_proj)

    kernel = functools.partial(
        _tower_kernel, use_proj=use_proj, inv_d=1.0 / float(d_valid),
        n_pad=float(Dp - d_valid), eps=eps)

    out = pl.pallas_call(
        kernel,
        out_shape=jax.ShapeDtypeStruct((Np, Ep), jnp.float32),
        grid_spec=pltpu.PrefetchScalarGridSpec(
            num_scalar_prefetch=0,
            grid=(Mp // TM,),
            in_specs=in_specs,
            out_specs=pl.BlockSpec((Np, Ep), lambda i: (0, 0)),
            scratch_shapes=[pltpu.VMEM((Np, Dp), jnp.float32)],
        ),
        compiler_params=pltpu.CompilerParams(
            # The row-tile axis is a reduction into the resident pooled
            # accumulator, so it must be "arbitrary".
            dimension_semantics=("arbitrary",),
            vmem_limit_bytes=32 * 1024 * 1024,
        ),
    )(*operands)
    return out[:N, :out_valid]


def _scatter_mask(bbox_index, bbox_list, batch, seq_len):
    """Build the scattered (N, batch*seq_len) pooling mask:
    mask[n, bbox_index[n]*seq_len + l] = bbox_list[n, l].  Handles repeated
    indices and avoids duplicating the feature slab per bbox."""
    idx = bbox_index.astype(jnp.int32)
    onehot = (idx[:, None] == jnp.arange(batch, dtype=jnp.int32)[None, :]).astype(jnp.float32)
    return (onehot[:, :, None] * bbox_list.astype(jnp.float32)[:, None, :]).reshape(
        idx.shape[0], batch * seq_len)


# -----------------------------------------------------------------------------
# TypoCLIP (synthetic parameters, deterministic init)
# -----------------------------------------------------------------------------
class TypoCLIPPallas:
    def __init__(
        self,
        embed_dim=32,
        image_size=16,
        image_channels=4,
        patch=8,
        vision_d_model=32,
        text_d_model=48,
        vocab_size=64,
        max_length=8,
        init_logit_scale=math.log(1 / 0.07),
        init_logit_bias=None,
        multi_logit_scale=4,
        multi_logit_scale_v=math.log(1 / 0.01),
    ):
        self.patch = patch
        self.max_length = max_length
        self.embed_dim = embed_dim
        self.vision_d_model = vision_d_model
        self.text_d_model = text_d_model

        K = patch * patch * image_channels
        self.kp_v = _round_up(K, LANE)                 # 256 (already MXU aligned)
        self.dp_v = _round_up(vision_d_model, LANE)    # 128
        self.kp_t = _round_up(text_d_model, LANE)      # 128
        self.dp_t = _round_up(text_d_model, LANE)      # 128
        self.ep = _round_up(embed_dim, LANE)           # 128

        k0 = jax.random.PRNGKey(0)
        ks = jax.random.split(k0, 6)

        # vision tower (DINOv2 stand-in): patch-embed matmul + LayerNorm
        # TODO(synk): full DINOv2 transformer blocks not reproducible without checkpoint.
        w_patch = jax.random.normal(ks[0], (K, vision_d_model), jnp.float32) * 0.02
        self.w_patch = _pad_to(w_patch, (self.kp_v, self.dp_v)).astype(jnp.bfloat16)
        self.v_gamma = _pad_to(jnp.ones((1, vision_d_model), jnp.float32), (1, self.dp_v))
        self.v_beta = jnp.zeros((1, self.dp_v), jnp.float32)

        # text tower (T5 encoder stand-in): embedding + dense + LayerNorm
        # TODO(synk): T5 encoder stack / HF tokenizer not reproducible without checkpoint.
        emb = jax.random.normal(ks[1], (vocab_size, text_d_model), jnp.float32) * 0.02
        self.emb = _pad_to(emb, (vocab_size, self.kp_t))          # padded lanes are 0
        w_enc = jax.random.normal(ks[2], (text_d_model, text_d_model), jnp.float32) * 0.02
        self.w_enc = _pad_to(w_enc, (self.kp_t, self.dp_t)).astype(jnp.bfloat16)
        self.t_gamma = _pad_to(jnp.ones((1, text_d_model), jnp.float32), (1, self.dp_t))
        self.t_beta = jnp.zeros((1, self.dp_t), jnp.float32)

        # text proj (proj_type='linear', bias=False); zero-padded, bf16 MXU operand
        w_proj = jax.random.normal(ks[3], (text_d_model, embed_dim), jnp.float32) * 0.02
        self.w_proj = _pad_to(w_proj, (self.dp_t, self.ep)).astype(jnp.bfloat16)

        # scales
        self.logit_scale = jnp.asarray(init_logit_scale, jnp.float32)
        self.logit_bias = (
            jnp.asarray(init_logit_bias, jnp.float32) if init_logit_bias is not None else None
        )
        self.multi_logit_scale = (
            jnp.full((multi_logit_scale,), multi_logit_scale_v, jnp.float32)
            if multi_logit_scale is not None
            else None
        )

    # ---- vision tower forward (normalize=True in TypoCLIP.forward) ----
    def encode_image(self, image_nhwc, bbox_dict):
        B, H, W, C = image_nhwc.shape
        p = self.patch
        # patchify (plain JAX glue) -> (B, P, p*p*C)
        x = image_nhwc.reshape(B, H // p, p, W // p, p, C)
        x = x.transpose(0, 1, 3, 2, 4, 5).reshape(B, (H // p) * (W // p), p * p * C)
        P = x.shape[1]
        x2d = _pad_to(x.reshape(B * P, p * p * C), (B * P, self.kp_v)).astype(jnp.bfloat16)
        mask = _scatter_mask(bbox_dict["bbox_index"], bbox_dict["bbox_list"], B, P)
        # DINOv2 head is never applied to patch tokens in the reference forward -> no proj.
        # (Matches the (N, embed_dim) contract because vision_d_model == embed_dim here.)
        return tower_forward(
            x2d, self.w_patch, self.v_gamma, self.v_beta, mask, None,
            d_valid=self.vision_d_model, out_valid=self.vision_d_model,
        )

    # ---- text tower forward (normalize=True in TypoCLIP.forward) ----
    def encode_text(self, token_ids, bbox_dict, text_attn_mask=None):
        # TODO(synk): attention over text_attn_mask happens inside the (stubbed) T5 encoder.
        Bt, L = token_ids.shape
        embeds = jnp.take(self.emb, token_ids, axis=0)        # (Bt, L, Kp_t) -- glue gather
        x2d = embeds.reshape(Bt * L, self.kp_t).astype(jnp.bfloat16)
        mask = _scatter_mask(bbox_dict["bbox_index"], bbox_dict["bbox_list"], Bt, L)
        return tower_forward(
            x2d, self.w_enc, self.t_gamma, self.t_beta, mask, self.w_proj,
            d_valid=self.text_d_model, out_valid=self.embed_dim,
        )

    def forward(self, image=None, text_ids=None, vision_bbox_dict=None, text_bbox_dict=None,
                text_attn_mask=None):
        image_features = (
            self.encode_image(image, vision_bbox_dict) if image is not None else None
        )
        text_features = (
            self.encode_text(text_ids, text_bbox_dict, text_attn_mask)
            if text_ids is not None
            else None
        )
        out = {
            "image_features": image_features,
            "text_features": text_features,
            "logit_scale": jnp.exp(self.logit_scale),
            "multi_logit_scale": (
                [jnp.exp(v) for v in self.multi_logit_scale]
                if self.multi_logit_scale is not None
                else None
            ),
        }
        if self.logit_bias is not None:
            out["logit_bias"] = self.logit_bias
        return out


if __name__ == "__main__":
    key = jax.random.PRNGKey(0)
    k_img, k_txt, k_vm, k_tm, k_vi, k_ti = jax.random.split(key, 6)

    B, C, Himg, Wimg = 2, 4, 16, 16
    Bt, L, vocab = 2, 8, 64
    Nv, Nt = 3, 3

    image = jax.random.normal(k_img, (B, Himg, Wimg, C), jnp.float32)  # NHWC
    text_ids = jax.random.randint(k_txt, (Bt, L), 0, vocab)

    vision_bbox_dict = {
        "bbox_index": jax.random.randint(k_vi, (Nv,), 0, B).astype(jnp.int32),
        "bbox_list": jax.random.bernoulli(k_vm, 0.5, (Nv, 4)).astype(jnp.float32),
    }
    text_bbox_dict = {
        "bbox_index": jax.random.randint(k_ti, (Nt,), 0, Bt).astype(jnp.int32),
        "bbox_list": jax.random.bernoulli(k_tm, 0.5, (Nt, L)).astype(jnp.float32),
    }

    model = TypoCLIPPallas()
    out = model.forward(
        image=image,
        text_ids=text_ids,
        vision_bbox_dict=vision_bbox_dict,
        text_bbox_dict=text_bbox_dict,
    )
    jax.block_until_ready(out["image_features"])
    jax.block_until_ready(out["text_features"])
    jax.block_until_ready(out["logit_scale"])
    assert out["image_features"].shape == (Nv, 32)
    assert out["text_features"].shape == (Nt, 32)
    assert bool(jnp.all(jnp.isfinite(out["image_features"])))
    assert bool(jnp.all(jnp.isfinite(out["text_features"])))
    print("KERNEL_OK")
</pallas_src>

<mosaic_0001>
module attributes {stable_mosaic.version = 11 : i64} {
  func.func @_tower_kernel(%arg0: i32, %arg1: memref<8x256xbf16, #tpu.memory_space<vmem>>, %arg2: memref<256x128xbf16, #tpu.memory_space<vmem>>, %arg3: memref<1x128xf32, #tpu.memory_space<vmem>>, %arg4: memref<1x128xf32, #tpu.memory_space<vmem>>, %arg5: memref<8x8xbf16, #tpu.memory_space<vmem>>, %arg6: memref<8x128xf32, #tpu.memory_space<vmem>>, %arg7: memref<8x128xf32, #tpu.memory_space<vmem>>) attributes {dimension_semantics = [#tpu.dimension_semantics<arbitrary>], iteration_bounds = array<i64: 1>, scalar_prefetch = 0 : i64, scratch_operands = 1 : i64, tpu.core_type = #tpu.core_type<tc>, window_params = [{transform_indices = @transform_0, window_bounds = array<i64: 8, 256>}, {pipeline_mode = #tpu.pipeline_mode<synchronous>, transform_indices = @transform_1, window_bounds = array<i64: 256, 128>}, {pipeline_mode = #tpu.pipeline_mode<synchronous>, transform_indices = @transform_2, window_bounds = array<i64: 1, 128>}, {pipeline_mode = #tpu.pipeline_mode<synchronous>, transform_indices = @transform_3, window_bounds = array<i64: 1, 128>}, {transform_indices = @transform_4, window_bounds = array<i64: 8, 8>}, {pipeline_mode = #tpu.pipeline_mode<synchronous>, transform_indices = @transform_5, window_bounds = array<i64: 8, 128>}]} {
    %c0_i32 = arith.constant 0 : i32
    %0 = arith.cmpi eq, %arg0, %c0_i32 : i32
    %1 = arith.extui %0 : i1 to i32
    %c0_i32_0 = arith.constant 0 : i32
    %2 = arith.cmpi ne, %1, %c0_i32_0 : i32
    scf.if %2 {
      %cst_23 = arith.constant 0.000000e+00 : f32
      %41 = vector.broadcast %cst_23 : f32 to vector<8x128xf32>
      %c0_24 = arith.constant 0 : index
      %c0_25 = arith.constant 0 : index
      %42 = vector.load %arg7[%c0_24, %c0_25] : memref<8x128xf32, #tpu.memory_space<vmem>>, vector<8x128xf32>
      tpu.vector_store %arg7[%c0_24, %c0_25], %41 {strides = array<i32>} : memref<8x128xf32, #tpu.memory_space<vmem>>, vector<8x128xf32>,
    } else {
    }
    %c0 = arith.constant 0 : index
    %c0_1 = arith.constant 0 : index
    %3 = vector.load %arg1[%c0, %c0_1] : memref<8x256xbf16, #tpu.memory_space<vmem>>, vector<8x256xbf16>
    %c0_2 = arith.constant 0 : index
    %c0_3 = arith.constant 0 : index
    %4 = vector.load %arg2[%c0_2, %c0_3] : memref<256x128xbf16, #tpu.memory_space<vmem>>, vector<256x128xbf16>
    %cst = arith.constant dense<0.000000e+00> : vector<8x128xf32>
    %5 = tpu.matmul %3, %4, %cst {dimension_numbers = #tpu.dot_dimension_numbers<[1], [0], [0], [1], [0, 0, 1, 1], [], []>} : vector<8x256xbf16>, vector<256x128xbf16>, vector<8x128xf32> -> vector<8x128xf32>
    %cst_4 = arith.constant dense<0.000000e+00> : vector<8xf32>
    %6 = vector.multi_reduction <add>, %5, %cst_4 [1] : vector<8x128xf32> to vector<8xf32>
    %7 = vector.shape_cast %6 : vector<8xf32> to vector<8x1xf32>
    %cst_5 = arith.constant 3.125000e-02 : f32
    %8 = vector.broadcast %cst_5 : f32 to vector<8x1xf32>
    %9 = arith.mulf %7, %8 : vector<8x1xf32>
    %10 = vector.broadcast %9 : vector<8x1xf32> to vector<8x128xf32>
    %11 = arith.subf %5, %10 : vector<8x128xf32>
    %12 = arith.mulf %11, %11 : vector<8x128xf32>
    %cst_6 = arith.constant dense<0.000000e+00> : vector<8xf32>
    %13 = vector.multi_reduction <add>, %12, %cst_6 [1] : vector<8x128xf32> to vector<8xf32>
    %14 = vector.shape_cast %13 : vector<8xf32> to vector<8x1xf32>
    %15 = arith.mulf %9, %9 : vector<8x1xf32>
    %cst_7 = arith.constant 9.600000e+01 : f32
    %16 = vector.broadcast %cst_7 : f32 to vector<8x1xf32>
    %17 = arith.mulf %16, %15 : vector<8x1xf32>
    %18 = arith.subf %14, %17 : vector<8x1xf32>
    %cst_8 = arith.constant 3.125000e-02 : f32
    %19 = vector.broadcast %cst_8 : f32 to vector<8x1xf32>
    %20 = arith.mulf %18, %19 : vector<8x1xf32>
    %cst_9 = arith.constant 9.99999974E-6 : f32
    %21 = vector.broadcast %cst_9 : f32 to vector<8x1xf32>
    %22 = arith.addf %20, %21 : vector<8x1xf32>
    %23 = math.rsqrt %22 : vector<8x1xf32>
    %24 = vector.broadcast %23 : vector<8x1xf32> to vector<8x128xf32>
    %25 = arith.mulf %11, %24 : vector<8x128xf32>
    %c0_10 = arith.constant 0 : index
    %c0_11 = arith.constant 0 : index
    %26 = vector.load %arg3[%c0_10, %c0_11] : memref<1x128xf32, #tpu.memory_space<vmem>>, vector<1x128xf32>
    %27 = vector.broadcast %26 : vector<1x128xf32> to vector<8x128xf32>
    %28 = arith.mulf %25, %27 : vector<8x128xf32>
    %c0_12 = arith.constant 0 : index
    %c0_13 = arith.constant 0 : index
    %29 = vector.load %arg4[%c0_12, %c0_13] : memref<1x128xf32, #tpu.memory_space<vmem>>, vector<1x128xf32>
    %30 = vector.broadcast %29 : vector<1x128xf32> to vector<8x128xf32>
    %31 = arith.addf %28, %30 : vector<8x128xf32>
    %c0_14 = arith.constant 0 : index
    %c0_15 = arith.constant 0 : index
    %32 = vector.load %arg7[%c0_14, %c0_15] : memref<8x128xf32, #tpu.memory_space<vmem>>, vector<8x128xf32>
    %c0_16 = arith.constant 0 : index
    %c0_17 = arith.constant 0 : index
    %33 = vector.load %arg5[%c0_16, %c0_17] : memref<8x8xbf16, #tpu.memory_space<vmem>>, vector<8x8xbf16>
    %34 = arith.truncf %31 : vector<8x128xf32> to vector<8x128xbf16>
    %cst_18 = arith.constant dense<0.000000e+00> : vector<8x128xf32>
    %35 = tpu.matmul %33, %34, %cst_18 {dimension_numbers = #tpu.dot_dimension_numbers<[1], [0], [0], [1], [0, 0, 1, 1], [], []>} : vector<8x8xbf16>, vector<8x128xbf16>, vector<8x128xf32> -> vector<8x128xf32>
    %36 = arith.addf %32, %35 : vector<8x128xf32>
    %c0_19 = arith.constant 0 : index
    %c0_20 = arith.constant 0 : index
    %37 = vector.load %arg7[%c0_19, %c0_20] : memref<8x128xf32, #tpu.memory_space<vmem>>, vector<8x128xf32>
    tpu.vector_store %arg7[%c0_19, %c0_20], %36 {strides = array<i32>} : memref<8x128xf32, #tpu.memory_space<vmem>>, vector<8x128xf32>,
    %c0_i32_21 = arith.constant 0 : i32
    %38 = arith.cmpi eq, %arg0, %c0_i32_21 : i32
    %39 = arith.extui %38 : i1 to i32
    %c0_i32_22 = arith.constant 0 : i32
    %40 = arith.cmpi ne, %39, %c0_i32_22 : i32
    scf.if %40 {
      %c0_23 = arith.constant 0 : index
      %c0_24 = arith.constant 0 : index
      %41 = vector.load %arg7[%c0_23, %c0_24] : memref<8x128xf32, #tpu.memory_space<vmem>>, vector<8x128xf32>
      %42 = arith.mulf %41, %41 : vector<8x128xf32>
      %cst_25 = arith.constant dense<0.000000e+00> : vector<8xf32>
      %43 = vector.multi_reduction <add>, %42, %cst_25 [1] : vector<8x128xf32> to vector<8xf32>
      %44 = vector.shape_cast %43 : vector<8xf32> to vector<8x1xf32>
      %cst_26 = arith.constant 1.000000e-24 : f32
      %45 = vector.broadcast %cst_26 : f32 to vector<8x1xf32>
      %46 = arith.maximumf %44, %45 : vector<8x1xf32>
      %47 = math.rsqrt %46 : vector<8x1xf32>
      %48 = vector.broadcast %47 : vector<8x1xf32> to vector<8x128xf32>
      %49 = arith.mulf %41, %48 : vector<8x128xf32>
      %c0_27 = arith.constant 0 : index
      %c0_28 = arith.constant 0 : index
      %50 = vector.load %arg6[%c0_27, %c0_28] : memref<8x128xf32, #tpu.memory_space<vmem>>, vector<8x128xf32>
      tpu.vector_store %arg6[%c0_27, %c0_28], %49 {strides = array<i32>} : memref<8x128xf32, #tpu.memory_space<vmem>>, vector<8x128xf32>,
    } else {
    }
    return
  }
  func.func @transform_0(%arg0: i32) -> (i32, i32) {
    %c0_i32 = arith.constant 0 : i32
    %c0_i32_0 = arith.constant 0 : i32
    return %arg0, %c0_i32 : i32, i32
  }
  func.func @transform_1(%arg0: i32) -> (i32, i32) {
    %c0_i32 = arith.constant 0 : i32
    %c0_i32_0 = arith.constant 0 : i32
    %c0_i32_1 = arith.constant 0 : i32
    return %c0_i32, %c0_i32_0 : i32, i32
  }
  func.func @transform_2(%arg0: i32) -> (i32, i32) {
    %c0_i32 = arith.constant 0 : i32
    %c0_i32_0 = arith.constant 0 : i32
    %c0_i32_1 = arith.constant 0 : i32
    return %c0_i32, %c0_i32_0 : i32, i32
  }
  func.func @transform_3(%arg0: i32) -> (i32, i32) {
    %c0_i32 = arith.constant 0 : i32
    %c0_i32_0 = arith.constant 0 : i32
    %c0_i32_1 = arith.constant 0 : i32
    return %c0_i32, %c0_i32_0 : i32, i32
  }
  func.func @transform_4(%arg0: i32) -> (i32, i32) {
    %c0_i32 = arith.constant 0 : i32
    %c0_i32_0 = arith.constant 0 : i32
    return %c0_i32, %arg0 : i32, i32
  }
  func.func @transform_5(%arg0: i32) -> (i32, i32) {
    %c0_i32 = arith.constant 0 : i32
    %c0_i32_0 = arith.constant 0 : i32
    %c0_i32_1 = arith.constant 0 : i32
    return %c0_i32, %c0_i32_0 : i32, i32
  }
}

</mosaic_0001>

<llo_original>
// kernel: tpu_custom_call.1
$region0: #{tpu_custom_call.1}
  #allocation0 [shape = 'u32[]', space=smem, size = 0x4, offset = 0x4, fixed_abs, tag = 'smem constant byte address 0x4 - core index']
  #allocation1 [shape = 'u32[72,128]{1,0:T(1,128)}', space=vmem, size = 0x9000, scoped, tag = 'internal scratch']
  #allocation2 [shape = 'f32[8,128]{1,0:T(8,128)}', space=vmem, size = 0x1000, scoped, tag = 'scratch operand']
  %s0 = inlined_call_operand.hbm [shape: bf16[8,256], index: 0, kind: input, shape index: {}]
  %s1 = inlined_call_operand.hbm [shape: bf16[256,128], index: 1, kind: input, shape index: {}]
  %s2 = inlined_call_operand.vmem [shape: f32[1,128], index: 2, kind: input, shape index: {}]
  %s3 = inlined_call_operand.vmem [shape: f32[1,128], index: 3, kind: input, shape index: {}]
  %s4 = inlined_call_operand.hbm [shape: bf16[8,8], index: 4, kind: input, shape index: {}]
  %s5 = inlined_call_operand.hbm [shape: f32[8,128], index: 5, kind: output, shape index: {}]
  %s6 = sld [smem:[#allocation0]]
  $region50: #{tpu_custom_call.1} parent=0
    _
  %s8 = ssub.s32 1, %s6
  %s9 = scalar_select 0, %s8, %s6
  $region1: #{tpu_custom_call.1} parent=0
    #allocation3 [shape = 'u8[4096]{0}', space=vmem, size = 0x1000, scoped, tag = 'input window, operand 0, single buffered']
    #allocation4 [shape = 's32[1]{0}', space=sflag, size = 0x4, scoped, tag = 'scoped memory for tpu_custom_call.1']
    #allocation5 [shape = 's32[1]{0}', space=sflag, size = 0x4, scoped, tag = 'scoped memory for tpu_custom_call.1']
    #allocation6 [shape = 'u8[65536]{0}', space=vmem, size = 0x10000, scoped, tag = 'input window, operand 1, single buffered']
    #allocation7 [shape = 's32[1]{0}', space=sflag, size = 0x4, scoped, tag = 'scoped memory for tpu_custom_call.1']
    #allocation8 [shape = 'u8[2048]{0}', space=vmem, size = 0x800, scoped, tag = 'input window, operand 4, single buffered']
    #allocation9 [shape = 'u8[4096]{0}', space=vmem, size = 0x1000, scoped, tag = 'output window, operand 0, single buffered']
    %10 = vsyncpa [#allocation4], 0
    %11 = vsyncpa [#allocation7], 0
    %12 = vsyncpa [#allocation5], 0
    // Predicated region
    $region2: #{tpu_custom_call.1} parent=1 // pred_check
      _
    $region3: #{tpu_custom_call.1} parent=1 // pred_check_branch
      %14 = sbr.rel (0) target = $region5
    $region4: #{tpu_custom_call.1} parent=1 // pred_region
      %16 = vsyncadd [#allocation4], 0
      %s18 = sshll.u32 %s0, 4
      %s19 = int_to_ptr.hbm [resolvable:$true] %s18
      %s20 = sshll.u32 [#allocation3], 4
      %s21 = int_to_ptr.vmem [resolvable:$true] %s20
      %23 = dma.hbm_to_vmem [thread:$0]  %s19, 128, %s21, [#allocation4]
    $region5: #{tpu_custom_call.1} parent=1 // pred_fallthru
      _
    // Predicated region
    $region6: #{tpu_custom_call.1} parent=1 // pred_check
      _
    $region7: #{tpu_custom_call.1} parent=1 // pred_check_branch
      %25 = sbr.rel (0) target = $region9
    $region8: #{tpu_custom_call.1} parent=1 // pred_region
      %27 = vsyncadd [#allocation7], 0
      %s28 = sshll.u32 %s1, 4
      %s29 = int_to_ptr.hbm [resolvable:$true] %s28
      %s30 = sshll.u32 [#allocation6], 4
      %s31 = int_to_ptr.vmem [resolvable:$true] %s30
      %36 = dma.hbm_to_vmem [thread:$0]  %s29, 2048, %s31, [#allocation7], 64, 64, 4
    $region9: #{tpu_custom_call.1} parent=1 // pred_fallthru
      _
    // Predicated region
    $region10: #{tpu_custom_call.1} parent=1 // pred_check
      _
    $region11: #{tpu_custom_call.1} parent=1 // pred_check_branch
      %38 = sbr.rel (0) target = $region13
    $region12: #{tpu_custom_call.1} parent=1 // pred_region
      _
    $region13: #{tpu_custom_call.1} parent=1 // pred_fallthru
      _
    // Predicated region
    $region14: #{tpu_custom_call.1} parent=1 // pred_check
      _
    $region15: #{tpu_custom_call.1} parent=1 // pred_check_branch
      %40 = sbr.rel (0) target = $region17
    $region16: #{tpu_custom_call.1} parent=1 // pred_region
      _
    $region17: #{tpu_custom_call.1} parent=1 // pred_fallthru
      _
    // Predicated region
    $region18: #{tpu_custom_call.1} parent=1 // pred_check
      _
    $region19: #{tpu_custom_call.1} parent=1 // pred_check_branch
      %42 = sbr.rel (0) target = $region21
    $region20: #{tpu_custom_call.1} parent=1 // pred_region
      %44 = vsyncadd [#allocation7], 0
      %s46 = sshll.u32 %s4, 4
      %s47 = int_to_ptr.hbm [resolvable:$true] %s46
      %s48 = sshll.u32 [#allocation8], 4
      %s49 = int_to_ptr.vmem [resolvable:$true] %s48
      %51 = dma.hbm_to_vmem [thread:$0]  %s47, 64, %s49, [#allocation7]
    $region21: #{tpu_custom_call.1} parent=1 // pred_fallthru
      _
    // Predicated region
    $region22: #{tpu_custom_call.1} parent=1 // pred_check
      _
    $region23: #{tpu_custom_call.1} parent=1 // pred_check_branch
      %53 = sbr.rel (0) target = $region25
    $region24: #{tpu_custom_call.1} parent=1 // pred_region
      %55 = dma.done [#allocation4], 128
    $region25: #{tpu_custom_call.1} parent=1 // pred_fallthru
      _
    // Predicated region
    $region26: #{tpu_custom_call.1} parent=1 // pred_check
      _
    $region27: #{tpu_custom_call.1} parent=1 // pred_check_branch
      %57 = sbr.rel (0) target = $region29
    $region28: #{tpu_custom_call.1} parent=1 // pred_region
      %59 = dma.done [#allocation7], 2048
    $region29: #{tpu_custom_call.1} parent=1 // pred_fallthru
      _
    // Predicated region
    $region30: #{tpu_custom_call.1} parent=1 // pred_check
      _
    $region31: #{tpu_custom_call.1} parent=1 // pred_check_branch
      %61 = sbr.rel (0) target = $region33
    $region32: #{tpu_custom_call.1} parent=1 // pred_region
      %63 = dma.done [#allocation7], 64
    $region33: #{tpu_custom_call.1} parent=1 // pred_fallthru
      _
    %p65 = scmp.eq.s32.totalorder 0, 0
    // Predicated region
    $region34: #{tpu_custom_call.1} parent=1 // pred_check
      %p66 = pneg %p65
    $region35: #{tpu_custom_call.1} parent=1 // pred_check_branch
      %68 = sbr.rel (%p66) target = $region37
    $region36: #{tpu_custom_call.1} parent=1 // pred_region
      %69 = vst [vmem:[#allocation2] sm:$0xff] 0.0
    $region37: #{tpu_custom_call.1} parent=1 // pred_fallthru
      _
    %v70 = vld [vmem:[#allocation3] sm:$0xff]
    %v71 = vld [vmem:[#allocation6] sm:$0xf]
    %v72 = vld [vmem:[#allocation6 + $0x4] sm:$0xf]
    %v73 = vld [vmem:[#allocation6 + $0x8] sm:$0xf]
    %v74 = vld [vmem:[#allocation6 + $0xc] sm:$0xf]
    %v75 = vld [vmem:[#allocation6 + $0x10] sm:$0xf]
    %v76 = vld [vmem:[#allocation6 + $0x14] sm:$0xf]
    %v77 = vld [vmem:[#allocation6 + $0x18] sm:$0xf]
    %v78 = vld [vmem:[#allocation6 + $0x1c] sm:$0xf]
    %v79 = vld [vmem:[#allocation6 + $0x20] sm:$0xf]
    %v80 = vld [vmem:[#allocation6 + $0x24] sm:$0xf]
    %v81 = vld [vmem:[#allocation6 + $0x28] sm:$0xf]
    %v82 = vld [vmem:[#allocation6 + $0x2c] sm:$0xf]
    %v83 = vld [vmem:[#allocation6 + $0x30] sm:$0xf]
    %v84 = vld [vmem:[#allocation6 + $0x34] sm:$0xf]
    %v85 = vld [vmem:[#allocation6 + $0x38] sm:$0xf]
    %v86 = vld [vmem:[#allocation6 + $0x3c] sm:$0xf]
    %v87 = vld [vmem:[#allocation6 + $0x40] sm:$0xf]
    %v88 = vld [vmem:[#allocation6 + $0x44] sm:$0xf]
    %v89 = vld [vmem:[#allocation6 + $0x48] sm:$0xf]
    %v90 = vld [vmem:[#allocation6 + $0x4c] sm:$0xf]
    %v91 = vld [vmem:[#allocation6 + $0x50] sm:$0xf]
    %v92 = vld [vmem:[#allocation6 + $0x54] sm:$0xf]
    %v93 = vld [vmem:[#allocation6 + $0x58] sm:$0xf]
    %v94 = vld [vmem:[#allocation6 + $0x5c] sm:$0xf]
    %v95 = vld [vmem:[#allocation6 + $0x60] sm:$0xf]
    %v96 = vld [vmem:[#allocation6 + $0x64] sm:$0xf]
    %v97 = vld [vmem:[#allocation6 + $0x68] sm:$0xf]
    %v98 = vld [vmem:[#allocation6 + $0x6c] sm:$0xf]
    %v99 = vld [vmem:[#allocation6 + $0x70] sm:$0xf]
    %v100 = vld [vmem:[#allocation6 + $0x74] sm:$0xf]
    %v101 = vld [vmem:[#allocation6 + $0x78] sm:$0xf]
    %v102 = vld [vmem:[#allocation6 + $0x7c] sm:$0xf]
    %v104 = vunpack.c.l.b16 %v70
    %v105 = vunpack.c.h.b16 %v70
    %v106 = vpack.c.b16 %v104, %v104
    %v107 = vpack.c.b16 %v105, %v105
    %v142 = vunpack.c.l.b16 %v71
    %v143 = vunpack.c.l.b16 %v72
    %v144 = vunpack.c.l.b16 %v73
    %v145 = vunpack.c.l.b16 %v74
    %v146 = vunpack.c.l.b16 %v75
    %v147 = vunpack.c.l.b16 %v76
    %v148 = vunpack.c.l.b16 %v77
    %v149 = vunpack.c.l.b16 %v78
    %v150 = vunpack.c.l.b16 %v79
    %v151 = vunpack.c.l.b16 %v80
    %v152 = vunpack.c.l.b16 %v81
    %v153 = vunpack.c.l.b16 %v82
    %v154 = vunpack.c.l.b16 %v83
    %v155 = vunpack.c.l.b16 %v84
    %v156 = vunpack.c.l.b16 %v85
    %v157 = vunpack.c.l.b16 %v86
    %v158 = vunpack.c.l.b16 %v87
    %v159 = vunpack.c.l.b16 %v88
    %v160 = vunpack.c.l.b16 %v89
    %v161 = vunpack.c.l.b16 %v90
    %v162 = vunpack.c.l.b16 %v91
    %v163 = vunpack.c.l.b16 %v92
    %v164 = vunpack.c.l.b16 %v93
    %v165 = vunpack.c.l.b16 %v94
    %v166 = vunpack.c.l.b16 %v95
    %v167 = vunpack.c.l.b16 %v96
    %v168 = vunpack.c.l.b16 %v97
    %v169 = vunpack.c.l.b16 %v98
    %v170 = vunpack.c.l.b16 %v99
    %v171 = vunpack.c.l.b16 %v100
    %v172 = vunpack.c.l.b16 %v101
    %v173 = vunpack.c.l.b16 %v102
    %v174 = vpack.c.b16 %v143, %v142
    %v175 = vpack.c.b16 %v145, %v144
    %v176 = vpack.c.b16 %v147, %v146
    %v177 = vpack.c.b16 %v149, %v148
    %v178 = vpack.c.b16 %v151, %v150
    %v179 = vpack.c.b16 %v153, %v152
    %v180 = vpack.c.b16 %v155, %v154
    %v181 = vpack.c.b16 %v157, %v156
    %v182 = vpack.c.b16 %v159, %v158
    %v183 = vpack.c.b16 %v161, %v160
    %v184 = vpack.c.b16 %v163, %v162
    %v185 = vpack.c.b16 %v165, %v164
    %v186 = vpack.c.b16 %v167, %v166
    %v187 = vpack.c.b16 %v169, %v168
    %v188 = vpack.c.b16 %v171, %v170
    %v189 = vpack.c.b16 %v173, %v172
    %206 = vmatpush.bf16.msra.mxu0 %v181
    %207 = vmatpush.bf16.msra.mxu0 %v180
    %208 = vmatpush.bf16.msra.mxu0 %v179
    %209 = vmatpush.bf16.msra.mxu0 %v178
    %210 = vmatpush.bf16.msra.mxu0 %v177
    %211 = vmatpush.bf16.msra.mxu0 %v176
    %212 = vmatpush.bf16.msra.mxu0 %v175
    %213 = vmatpush.bf16.msra.mxu0 %v174
    %214 = vmatmul.bf16.gmra.mxu0 %v106
    %v215 = vpop.f32.mrf.mxu0
    %v216 = vadd.f32 0.0, %v215
    %v217 = vpop.f32.mrf.mxu0
    %218 = vdwg.mxu0
    %219 = vmatpush.bf16.msra.mxu0 %v189
    %220 = vmatpush.bf16.msra.mxu0 %v188
    %221 = vmatpush.bf16.msra.mxu0 %v187
    %222 = vmatpush.bf16.msra.mxu0 %v186
    %223 = vmatpush.bf16.msra.mxu0 %v185
    %224 = vmatpush.bf16.msra.mxu0 %v184
    %225 = vmatpush.bf16.msra.mxu0 %v183
    %226 = vmatpush.bf16.msra.mxu0 %v182
    %227 = vmatmul.bf16.gmra.mxu0 %v107
    %v228 = vpop.f32.mrf.mxu0
    %v229 = vadd.f32 %v216, %v228
    %v230 = vpop.f32.mrf.mxu0
    %231 = vdwg.mxu0
    %232 = vadd.xlane.f32.xlu0 %v229
    %v233 = vpop.xlane.xlu0 %232
    %v234 = vmul.f32 %v233, 0.03125
    %v235 = vsub.f32 %v229, %v234
    %v236 = vmul.f32 %v235, %v235
    %237 = vadd.xlane.f32.xlu0 %v236
    %v238 = vpop.xlane.xlu0 %237
    %v239 = vmul.f32 %v234, %v234
    %v240 = vmul.f32 %v239, 96.0
    %v241 = vsub.f32 %v238, %v240
    %v242 = vmul.f32 %v241, 0.03125
    %v243 = vadd.f32 %v242, 1e-05
    %v244 = vrsqrt.pop %v243
    %v245 = vmul.f32 %v244, %v243
    %v246 = vmul.f32 %v245, %v244
    %v247 = vmul.f32 0.5, %v246
    %v248 = vsub.f32 1.5, %v247
    %v249 = vmul.f32 %v244, %v248
    %vm250 = vweird.f32 %v243
    %vm251 = vweird.f32 %v244
    %vm252 = vmor %vm250, %vm251
    %v253 = vsel %vm252, %v244, %v249
    %v254 = vmul.f32 %v235, %v253
    %v255 = vld [vmem:[%s2] sm:$0x1]
    %v257 = vperm.slane %v255, 0
    %v259 = vmul.f32 %v254, %v257
    %v260 = vld [vmem:[%s3] sm:$0x1]
    %v262 = vperm.slane %v260, 0
    %v264 = vadd.f32 %v259, %v262
    %v265 = vld [vmem:[#allocation2] sm:$0xff]
    %v266 = vld [vmem:[#allocation8] sm:$0xf]
    %v267 = vpack.c.bf16 %v264, %v264
    %vm268 = vcmask 64512
    %v270 = vsel %vm268, %v266, 0
    %vm272 = vcmask 1043456
    %v274 = vsel %vm272, %v267, 0
    %276 = vmatpush.bf16.msra.mxu0 0
    %277 = vmatpush.bf16.msra.mxu0 0
    %278 = vmatpush.bf16.msra.mxu0 0
    %279 = vmatpush.bf16.msra.mxu0 0
    %280 = vmatpush.bf16.msra.mxu0 0
    %281 = vmatpush.bf16.msra.mxu0 0
    %282 = vmatpush.bf16.msra.mxu0 0
    %283 = vmatpush.bf16.msra.mxu0 %v274
    %284 = vmatmul.bf16.gmra.mxu0 %v270
    %v285 = vpop.f32.mrf.mxu0
    %v286 = vadd.f32 0.0, %v285
    %v287 = vpop.f32.mrf.mxu0
    %288 = vdwg.mxu0
    %v289 = vadd.f32 %v265, %v286
    %290 = vst [vmem:[#allocation2] sm:$0xff] %v289
    // Predicated region
    $region38: #{tpu_custom_call.1} parent=1 // pred_check
      %p291 = pneg %p65
    $region39: #{tpu_custom_call.1} parent=1 // pred_check_branch
      %293 = sbr.rel (%p291) target = $region41
    $region40: #{tpu_custom_call.1} parent=1 // pred_region
      %v294 = vld [vmem:[#allocation2] sm:$0xff]
      %v295 = vmul.f32 %v294, %v294
      %296 = vadd.xlane.f32.xlu0 %v295
      %v297 = vpop.xlane.xlu0 %296
      %v298 = vmax.f32 %v297, 1e-24
      %v299 = vrsqrt.pop %v298
      %v300 = vmul.f32 %v299, %v298
      %v301 = vmul.f32 %v300, %v299
      %v302 = vmul.f32 0.5, %v301
      %v303 = vsub.f32 1.5, %v302
      %v304 = vmul.f32 %v299, %v303
      %vm305 = vweird.f32 %v298
      %vm306 = vweird.f32 %v299
      %vm307 = vmor %vm305, %vm306
      %v308 = vsel %vm307, %v299, %v304
      %v309 = vmul.f32 %v294, %v308
      %310 = vst [vmem:[#allocation9] sm:$0xff] %v309
    $region41: #{tpu_custom_call.1} parent=1 // pred_fallthru
      _
    // Predicated region
    $region42: #{tpu_custom_call.1} parent=1 // pred_check
      _
    $region43: #{tpu_custom_call.1} parent=1 // pred_check_branch
      %312 = sbr.rel (0) target = $region45
    $region44: #{tpu_custom_call.1} parent=1 // pred_region
      %314 = vsyncadd [#allocation5], 0
      %s316 = sshll.u32 [#allocation9], 4
      %s317 = int_to_ptr.vmem [resolvable:$true] %s316
      %s318 = sshll.u32 %s5, 4
      %s319 = int_to_ptr.hbm [resolvable:$true] %s318
      %321 = dma.vmem_to_hbm [thread:$0]  %s317, 128, %s319, [#allocation5]
    $region45: #{tpu_custom_call.1} parent=1 // pred_fallthru
      _
    // Predicated region
    $region46: #{tpu_custom_call.1} parent=1 // pred_check
      _
    $region47: #{tpu_custom_call.1} parent=1 // pred_check_branch
      %323 = sbr.rel (0) target = $region49
    $region48: #{tpu_custom_call.1} parent=1 // pred_region
      %325 = dma.done [#allocation5], 128
    $region49: #{tpu_custom_call.1} parent=1 // pred_fallthru
      _
    %326 = vsyncpa [#allocation4], 1
    %327 = vsyncpa [#allocation7], 1
    %328 = vsyncpa [#allocation5], 1

</llo_original>
